<compile_context>
chip_gen: v5e
topology: v5e:2x2
jax: 0.10.0
libtpu: 0.0.40
codegen_flags: <defaults>
</compile_context>

<pallas_src>
import jax
import jax.numpy as jnp
from jax.experimental import pallas as pl
from jax.experimental.pallas import tpu as pltpu


def _round_up(x: int, m: int) -> int:
    return ((x + m - 1) // m) * m


def _cdiv(a: int, b: int) -> int:
    return -(-a // b)


def _vmem_capacity_bytes() -> int:
    try:
        return int(pltpu.get_tpu_info().vmem_capacity_bytes)
    except Exception:
        return 64 << 20          # conservative fallback (v7x-sized VMEM)


def _make_l2norm_kernel(tm: int, d: int, chunk: int, tiles_per_core: int):
    def kernel(n_ref, x_ref, o_ref, acc_ref):
        c = pl.program_id(0)          # TensorCore split ("parallel")
        i = pl.program_id(1)          # row-tile within split ("arbitrary")

        @pl.when(i == 0)
        def _():
            acc_ref[...] = jnp.zeros_like(acc_ref)

        n_valid = n_ref[0]
        row0 = (c * tiles_per_core + i) * tm

        @pl.when(row0 < n_valid)       # skip compute on fully-empty tiles
        def _():
            # Row-wise sum of squares, chunked along D: only a (tm, chunk) f32
            # temp is live at a time; the tile stays in its storage dtype.
            sq = jnp.zeros((tm, 1), jnp.float32)
            col = 0
            while col < d:
                w = min(chunk, d - col)
                xc = x_ref[:, col:col + w].astype(jnp.float32)
                sq = sq + jnp.sum(xc * xc, axis=1, keepdims=True)
                col += w

            norm = jnp.sqrt(sq)                          # (tm, 1), EUP sqrt
            radius = norm + 1.0      # detached in torch; same value in forward
            dsq = (norm - radius) ** 2                   # (tm, 1)

            # Mask rows past N (boundary tile padding rows are unspecified).
            row_ids = row0 + jax.lax.broadcasted_iota(jnp.int32, (tm, 1), 0)
            dsq = jnp.where(row_ids < n_valid, dsq, 0.0)
            acc_ref[...] += jnp.sum(dsq, keepdims=True)

        @pl.when(i == pl.num_programs(1) - 1)
        def _():
            o_ref[0, :, :] = acc_ref[...]

    return kernel


def _l2norm_loss(x: jax.Array) -> jax.Array:
    """mean_i (||x_i|| - (stop_grad(||x_i||)+1))^2 for x of shape (N, D)."""
    assert x.ndim == 2
    n, d = x.shape
    assert n > 0 and d > 0

    itemsize = x.dtype.itemsize
    sub = max(8, 32 // max(1, itemsize))      # sublane granularity per dtype

    # ---- generation-gated VMEM budget & per-step DMA target -----------------
    vmem_cap = _vmem_capacity_bytes()
    if vmem_cap <= (64 << 20):                # v7x: 64 MiB VMEM per TensorCore
        tile_budget = 32 << 20
        target_step = 16 << 20
        vmem_limit = 48 << 20
    else:                                     # v5e / v6e: 128 MiB VMEM
        tile_budget = 72 << 20
        target_step = 8 << 20
        vmem_limit = 96 << 20

    # Column chunking for the f32 sum-of-squares (<=16 chunks, lane aligned).
    chunk = min(d, max(512, _round_up(_cdiv(d, 16), 128)))

    # Per-row VMEM cost: double-buffered input tile (storage dtype) + ~2 live
    # (tm, chunk) f32 chunk temps + a few (tm, 1) f32 temps, which pad out to
    # a full 128-lane vreg row (512 B / row each).
    bytes_per_row = 2 * d * itemsize + 8 * chunk + 6 * 512
    tm = min(tile_budget // bytes_per_row,
             max(target_step // max(1, d * itemsize), sub))
    tm = max(sub, (tm // sub) * sub)
    tm = min(tm, _round_up(n, sub))

    n_tiles = _cdiv(n, tm)
    num_splits = 2 if n_tiles >= 2 else 1      # engage both TCs on v7x
    tiles_per_core = _cdiv(n_tiles, num_splits)
    last_block = n_tiles - 1

    kernel = _make_l2norm_kernel(tm, d, chunk, tiles_per_core)

    def x_index_map(c, i, n_ref):
        # Clamp trailing (empty) tiles to the last valid block: Pallas skips
        # the repeated DMA and the kernel's pl.when / row-mask zero them out.
        return (jnp.minimum(c * tiles_per_core + i, last_block), 0)

    cost = pl.CostEstimate(
        flops=2 * n * d + 6 * n,
        transcendentals=n,
        bytes_accessed=n * d * itemsize + 4 * (num_splits + 1),
    )

    partials = pl.pallas_call(
        kernel,
        out_shape=jax.ShapeDtypeStruct((num_splits, 1, 1), jnp.float32),
        grid_spec=pltpu.PrefetchScalarGridSpec(
            num_scalar_prefetch=1,
            grid=(num_splits, tiles_per_core),
            in_specs=[pl.BlockSpec((tm, d), x_index_map)],
            out_specs=pl.BlockSpec((1, 1, 1), lambda c, i, n_ref: (c, 0, 0)),
            scratch_shapes=[pltpu.VMEM((1, 1), jnp.float32)],
        ),
        compiler_params=pltpu.CompilerParams(
            dimension_semantics=("parallel", "arbitrary"),
            vmem_limit_bytes=vmem_limit,
        ),
        cost_estimate=cost,
    )(jnp.asarray([n], dtype=jnp.int32), x)

    return jnp.sum(partials) / float(n)


def stepwise_adaptive_feature_norm_loss(f_s: jax.Array, f_t: jax.Array) -> jax.Array:
    """Forward SAFN loss. f_s: (N_s, D_s), f_t: (N_t, D_t). Returns f32 scalar."""
    assert f_s.ndim == 2 and f_t.ndim == 2
    return _l2norm_loss(f_s) + _l2norm_loss(f_t)


def _ref_loss(f_s, f_t):
    def ref_l(x):
        nrm = jnp.linalg.norm(x.astype(jnp.float32), axis=1)
        r = jax.lax.stop_gradient(nrm) + 1.0
        return jnp.mean((nrm - r) ** 2)
    return ref_l(f_s) + ref_l(f_t)


if __name__ == "__main__":
    key = jax.random.PRNGKey(0)
    k_s, k_t, k_s2, k_t2 = jax.random.split(key, 4)

    # Small shapes consistent with the module (already-flattened features).
    f_s = jax.random.normal(k_s, (2, 32), dtype=jnp.float32)
    f_t = jax.random.normal(k_t, (2, 32), dtype=jnp.float32)

    loss = stepwise_adaptive_feature_norm_loss(f_s, f_t)
    jax.block_until_ready(loss)
    ref = _ref_loss(f_s, f_t)
    assert jnp.allclose(loss, ref, atol=1e-5), (loss, ref)

    # Second check: unequal batch sizes / feature dims, bf16, exercises the
    # boundary-tile masking path (no wrapper-side padding anymore).
    f_s2 = jax.random.normal(k_s2, (37, 96), dtype=jnp.bfloat16)
    f_t2 = jax.random.normal(k_t2, (21, 64), dtype=jnp.bfloat16)
    loss2 = stepwise_adaptive_feature_norm_loss(f_s2, f_t2)
    jax.block_until_ready(loss2)
    ref2 = _ref_loss(f_s2, f_t2)
    assert jnp.allclose(loss2, ref2, atol=1e-3), (loss2, ref2)

    print("KERNEL_OK")
</pallas_src>

<mosaic_0001>
module attributes {stable_mosaic.version = 11 : i64} {
  func.func @kernel(%arg0: i32, %arg1: i32, %arg2: memref<1xi32, #tpu.memory_space<smem>>, %arg3: memref<8x32xf32, #tpu.memory_space<vmem>>, %arg4: memref<1x1x1xf32, #tpu.memory_space<vmem>>, %arg5: memref<1x1xf32, #tpu.memory_space<vmem>>) attributes {dimension_semantics = [#tpu.dimension_semantics<parallel>, #tpu.dimension_semantics<arbitrary>], iteration_bounds = array<i64: 1, 1>, scalar_prefetch = 1 : i64, scratch_operands = 1 : i64, tpu.core_type = #tpu.core_type<tc>, window_params = [{transform_indices = @transform_0, window_bounds = array<i64: 8, 32>}, {transform_indices = @transform_1, window_bounds = array<i64: 1, 1, 1>}]} {
    %c0_i32 = arith.constant 0 : i32
    %0 = arith.cmpi eq, %arg1, %c0_i32 : i32
    %1 = arith.extui %0 : i1 to i32
    %c0_i32_0 = arith.constant 0 : i32
    %2 = arith.cmpi ne, %1, %c0_i32_0 : i32
    scf.if %2 {
      %cst = arith.constant 0.000000e+00 : f32
      %13 = vector.broadcast %cst : f32 to vector<1x1xf32>
      %c0_4 = arith.constant 0 : index
      %c0_5 = arith.constant 0 : index
      %14 = vector.load %arg5[%c0_4, %c0_5] : memref<1x1xf32, #tpu.memory_space<vmem>>, vector<1x1xf32>
      tpu.vector_store %arg5[%c0_4, %c0_5], %13 {strides = array<i32>} : memref<1x1xf32, #tpu.memory_space<vmem>>, vector<1x1xf32>,
    } else {
    }
    %c0 = arith.constant 0 : index
    %3 = memref.load %arg2[%c0] : memref<1xi32, #tpu.memory_space<smem>>
    %c1_i32 = arith.constant 1 : i32
    %4 = arith.muli %arg0, %c1_i32 : i32
    %5 = arith.addi %4, %arg1 : i32
    %c8_i32 = arith.constant 8 : i32
    %6 = arith.muli %5, %c8_i32 : i32
    %7 = arith.cmpi slt, %6, %3 : i32
    %8 = arith.extui %7 : i1 to i32
    %c0_i32_1 = arith.constant 0 : i32
    %9 = arith.cmpi ne, %8, %c0_i32_1 : i32
    scf.if %9 {
      %cst = arith.constant 0.000000e+00 : f32
      %13 = vector.broadcast %cst : f32 to vector<8x1xf32>
      %c0_4 = arith.constant 0 : index
      %c0_5 = arith.constant 0 : index
      %14 = vector.load %arg3[%c0_4, %c0_5] : memref<8x32xf32, #tpu.memory_space<vmem>>, vector<8x32xf32>
      %15 = arith.mulf %14, %14 : vector<8x32xf32>
      %cst_6 = arith.constant dense<0.000000e+00> : vector<8xf32>
      %16 = vector.multi_reduction <add>, %15, %cst_6 [1] : vector<8x32xf32> to vector<8xf32>
      %17 = vector.shape_cast %16 : vector<8xf32> to vector<8x1xf32>
      %18 = arith.addf %13, %17 : vector<8x1xf32>
      %19 = math.sqrt %18 : vector<8x1xf32>
      %cst_7 = arith.constant 1.000000e+00 : f32
      %20 = vector.broadcast %cst_7 : f32 to vector<8x1xf32>
      %21 = arith.addf %19, %20 : vector<8x1xf32>
      %22 = arith.subf %19, %21 : vector<8x1xf32>
      %23 = arith.mulf %22, %22 : vector<8x1xf32>
      %24 = tpu.iota {dimensions = array<i32: 0>} : vector<8x1xi32>
      %25 = vector.broadcast %6 : i32 to vector<8x1xi32>
      %26 = arith.addi %25, %24 : vector<8x1xi32>
      %27 = vector.broadcast %3 : i32 to vector<8x1xi32>
      %28 = arith.cmpi slt, %26, %27 : vector<8x1xi32>
      %cst_8 = arith.constant 0.000000e+00 : f32
      %29 = vector.broadcast %cst_8 : f32 to vector<8x1xf32>
      %30 = arith.select %28, %23, %29 : vector<8x1xi1>, vector<8x1xf32>
      %c0_9 = arith.constant 0 : index
      %c0_10 = arith.constant 0 : index
      %31 = vector.load %arg5[%c0_9, %c0_10] : memref<1x1xf32, #tpu.memory_space<vmem>>, vector<1x1xf32>
      %32 = vector.shape_cast %30 : vector<8x1xf32> to vector<1x8x1xf32>
      %cst_11 = arith.constant dense<0.000000e+00> : vector<1xf32>
      %33 = vector.multi_reduction <add>, %32, %cst_11 [1, 2] : vector<1x8x1xf32> to vector<1xf32>
      %34 = vector.shape_cast %33 : vector<1xf32> to vector<1x1x1xf32>
      %35 = vector.extract %34[0, 0, 0] : f32 from vector<1x1x1xf32>
      %36 = vector.broadcast %35 : f32 to vector<1x1xf32>
      %37 = arith.addf %31, %36 : vector<1x1xf32>
      %c0_12 = arith.constant 0 : index
      %c0_13 = arith.constant 0 : index
      %38 = vector.load %arg5[%c0_12, %c0_13] : memref<1x1xf32, #tpu.memory_space<vmem>>, vector<1x1xf32>
      tpu.vector_store %arg5[%c0_12, %c0_13], %37 {strides = array<i32>} : memref<1x1xf32, #tpu.memory_space<vmem>>, vector<1x1xf32>,
    } else {
    }
    %c0_i32_2 = arith.constant 0 : i32
    %10 = arith.cmpi eq, %arg1, %c0_i32_2 : i32
    %11 = arith.extui %10 : i1 to i32
    %c0_i32_3 = arith.constant 0 : i32
    %12 = arith.cmpi ne, %11, %c0_i32_3 : i32
    scf.if %12 {
      %c0_4 = arith.constant 0 : index
      %c0_5 = arith.constant 0 : index
      %13 = vector.load %arg5[%c0_4, %c0_5] : memref<1x1xf32, #tpu.memory_space<vmem>>, vector<1x1xf32>
      %c0_6 = arith.constant 0 : index
      %c0_7 = arith.constant 0 : index
      %c0_8 = arith.constant 0 : index
      %14 = vector.load %arg4[%c0_6, %c0_7, %c0_8] : memref<1x1x1xf32, #tpu.memory_space<vmem>>, vector<1x1x1xf32>
      %15 = vector.shape_cast %14 : vector<1x1x1xf32> to vector<1x1xf32>
      %16 = vector.shape_cast %13 : vector<1x1xf32> to vector<1x1x1xf32>
      tpu.vector_store %arg4[%c0_6, %c0_7, %c0_8], %16 {strides = array<i32>} : memref<1x1x1xf32, #tpu.memory_space<vmem>>, vector<1x1x1xf32>,
    } else {
    }
    return
  }
  func.func @transform_0(%arg0: i32, %arg1: i32, %arg2: memref<1xi32, #tpu.memory_space<smem>>) -> (i32, i32) {
    %c1_i32 = arith.constant 1 : i32
    %0 = arith.muli %arg0, %c1_i32 : i32
    %1 = arith.addi %0, %arg1 : i32
    %c0_i32 = arith.constant 0 : i32
    %2 = arith.minsi %1, %c0_i32 : i32
    %c0_i32_0 = arith.constant 0 : i32
    %c0_i32_1 = arith.constant 0 : i32
    return %2, %c0_i32_0 : i32, i32
  }
  func.func @transform_1(%arg0: i32, %arg1: i32, %arg2: memref<1xi32, #tpu.memory_space<smem>>) -> (i32, i32, i32) {
    %c0_i32 = arith.constant 0 : i32
    %c0_i32_0 = arith.constant 0 : i32
    %c0_i32_1 = arith.constant 0 : i32
    return %arg0, %c0_i32, %c0_i32_0 : i32, i32, i32
  }
}

</mosaic_0001>

<llo_original>
// kernel: tpu_custom_call.1
$region0: #{tpu_custom_call.1}
  #allocation0 [shape = 'u32[]', space=smem, size = 0x4, offset = 0x4, fixed_abs, tag = 'smem constant byte address 0x4 - core index']
  #allocation1 [shape = 'u32[72,128]{1,0:T(1,128)}', space=vmem, size = 0x9000, scoped, tag = 'internal scratch']
  #allocation2 [shape = 'f32[1,1]{1,0:T(1,128)}', space=vmem, size = 0x200, scoped, tag = 'scratch operand']
  #allocation3 [shape = 's32[1]{0}', space=sflag, size = 0x4, scoped, tag = 'scoped memory for tpu_custom_call.1']
  #allocation4 [shape = 's32[1]{0:T(128)S(6)}', space=smem, size = 0x200, scoped, tag = 'prefetched SMEM operand 0']
  %s0 = inlined_call_operand.<no memory space> [shape: s32[1], index: 0, kind: input, shape index: {}]
  %s1 = inlined_call_operand.vmem [shape: f32[2,32], index: 1, kind: input, shape index: {}]
  %s2 = inlined_call_operand.hbm [shape: f32[1,1,1], index: 2, kind: output, shape index: {}]
  %s3 = sld [smem:[#allocation0]]
  $region26: #{tpu_custom_call.1} parent=0
    _
  %s5 = ssub.s32 1, %s3
  %s6 = scalar_select 0, %s5, %s3
  %7 = sst [smem:[#allocation4]] %s0
  $region1: #{tpu_custom_call.1} parent=0
    #allocation5 [shape = 'u8[512]{0}', space=vmem, size = 0x400, scoped, tag = 'output window, operand 0, single buffered']
    #allocation6 [shape = 's32[1]{0}', space=sflag, size = 0x4, scoped, tag = 'scoped memory for tpu_custom_call.1']
    %8 = vsyncpa [#allocation6], 0
    // Predicated region
    $region2: #{tpu_custom_call.1} parent=1 // pred_check
      _
    $region3: #{tpu_custom_call.1} parent=1 // pred_check_branch
      %10 = sbr.rel (0) target = $region5
    $region4: #{tpu_custom_call.1} parent=1 // pred_region
      %s11 = sadd.s32 0, 0
      %p12 = scmp.lt.s32.totalorder %s11, 0
      %s13 = scalar_select %p12, %s11, 0
      %s14 = smul.u32 4, %s13
      %s15 = ssub.s32 1, %s14
      %s16 = smul.u32 2, %s15
      %p17 = scmp.lt.s32.totalorder %s14, 0
      %s18 = scalar_select %p17, %s14, 0
      %s19 = smul.addr %s18, 2
      %s20 = scalar_lea.vmem %s1, %s19
      %s21 = sadd.s32 0, 0
      %p22 = scmp.lt.s32.totalorder %s21, 0
      %s23 = scalar_select %p22, %s21, 0
      %s24 = smul.u32 4, %s23
      %s25 = ssub.s32 1, %s24
      %s26 = smul.u32 2, %s25
    $region5: #{tpu_custom_call.1} parent=1 // pred_fallthru
      _
    %s27 = sadd.s32 0, 0
    %p28 = scmp.lt.s32.totalorder %s27, 0
    %s29 = scalar_select %p28, %s27, 0
    %s30 = smul.u32 4, %s29
    %s31 = ssub.s32 1, %s30
    %s32 = smul.u32 2, %s31
    %p33 = scmp.lt.s32.totalorder %s30, 0
    %s34 = scalar_select %p33, %s30, 0
    %s35 = smul.addr %s34, 2
    %s36 = scalar_lea.vmem %s1, %s35
    %s37 = sadd.s32 0, 0
    %p38 = scmp.lt.s32.totalorder %s37, 0
    %s39 = scalar_select %p38, %s37, 0
    %s40 = smul.u32 4, %s39
    %s41 = ssub.s32 1, %s40
    %s42 = smul.u32 2, %s41
    %p43 = scmp.lt.s32.totalorder %s40, 0
    %s44 = scalar_select %p43, %s40, 0
    %s45 = smul.addr %s44, 2
    %s46 = scalar_lea.vmem %s1, %s45
    %s47 = sadd.s32 0, 0
    %p48 = scmp.lt.s32.totalorder %s47, 0
    %s49 = scalar_select %p48, %s47, 0
    %s50 = smul.u32 4, %s49
    %s51 = ssub.s32 1, %s50
    %s52 = smul.u32 2, %s51
    %p53 = scmp.eq.s32.totalorder 0, 0
    // Predicated region
    $region6: #{tpu_custom_call.1} parent=1 // pred_check
      %p54 = pneg %p53
    $region7: #{tpu_custom_call.1} parent=1 // pred_check_branch
      %56 = sbr.rel (%p54) target = $region9
    $region8: #{tpu_custom_call.1} parent=1 // pred_region
      %vm57 = vcmask 0
      %58 = vst.msk [vmem:[#allocation2] sm:$0x1] %vm57, 0.0
    $region9: #{tpu_custom_call.1} parent=1 // pred_fallthru
      _
    %s59 = sld [smem:[#allocation4]]
    %s60 = sadd.s32 0, 0
    %s61 = smul.u32 %s60, 8
    %p62 = scmp.lt.s32.totalorder %s61, %s59
    // Predicated region
    $region10: #{tpu_custom_call.1} parent=1 // pred_check
      %p63 = pneg %p62
    $region11: #{tpu_custom_call.1} parent=1 // pred_check_branch
      %65 = sbr.rel (%p63) target = $region13
    $region12: #{tpu_custom_call.1} parent=1 // pred_region
      %v66 = vld [vmem:[%s46] sm:$0xff]
      %v67 = vmul.f32 %v66, %v66
      %vm68 = vcmask 261120
      %v69 = vsel %vm68, %v67, 0.0
      %70 = vadd.xlane.f32.xlu0 %v69
      %v71 = vpop.xlane.xlu0 %70
      %v72 = vadd.f32 %v71, 0.0
      %v73 = vrsqrt.pop %v72
      %v74 = vmul.f32 %v73, %v72
      %v75 = vmul.f32 %v74, %v73
      %v76 = vmul.f32 0.5, %v75
      %v77 = vsub.f32 1.5, %v76
      %v78 = vmul.f32 %v73, %v77
      %v79 = vmul.f32 %v72, %v78
      %vm80 = vcmp.eq.f32.partialorder %v72, inf
      %v81 = vsel %vm80, %v72, %v79
      %vm82 = vcmp.eq.f32.partialorder %v72, 0.0
      %v83 = vand.u32 %v72, 2147483648
      %v84 = vsel %vm82, %v83, %v81
      %v85 = vadd.f32 %v84, 1.0
      %v86 = vsub.f32 %v84, %v85
      %v87 = vmul.f32 %v86, %v86
      %v88 = vlaneseq
      %v89 = vshrl.u32 %v88, 7
      %v90 = vstv %s61
      %v91 = vadd.s32 %v90, %v89
      %v92 = vstv %s59
      %vm93 = vcmp.lt.s32.totalorder %v91, %v92
      %v94 = vsel %vm93, %v87, 0.0
      %v95 = vld [vmem:[#allocation2] sm:$0x1]
      %vm96 = vcmask 7168
      %v97 = vsel %vm96, %v94, 0.0
      %98 = vadd.xlane.f32.xlu0 %v97
      %v99 = vpop.xlane.xlu0 %98
      %v100 = vrot.slane %v99, 4
      %v101 = vadd.f32 %v99, %v100
      %v102 = vrot.slane %v101, 2
      %v103 = vadd.f32 %v101, %v102
      %v104 = vrot.slane %v103, 1
      %v105 = vadd.f32 %v103, %v104
      %s106 = vtos %v105
      %v107 = vstv %s106
      %v108 = vadd.f32 %v95, %v107
      %vm109 = vcmask 0
      %110 = vst.msk [vmem:[#allocation2] sm:$0x1] %vm109, %v108
    $region13: #{tpu_custom_call.1} parent=1 // pred_fallthru
      _
    // Predicated region
    $region14: #{tpu_custom_call.1} parent=1 // pred_check
      %p111 = pneg %p53
    $region15: #{tpu_custom_call.1} parent=1 // pred_check_branch
      %113 = sbr.rel (%p111) target = $region17
    $region16: #{tpu_custom_call.1} parent=1 // pred_region
      %v114 = vld [vmem:[#allocation2] sm:$0x1]
      %vm115 = vcmask 0
      %116 = vst.msk [vmem:[#allocation5] sm:$0x1] %vm115, %v114
    $region17: #{tpu_custom_call.1} parent=1 // pred_fallthru
      _
    // Predicated region
    $region18: #{tpu_custom_call.1} parent=1 // pred_check
      _
    $region19: #{tpu_custom_call.1} parent=1 // pred_check_branch
      %118 = sbr.rel (0) target = $region21
    $region20: #{tpu_custom_call.1} parent=1 // pred_region
      %120 = vsyncadd [#allocation6], 0
      %s122 = sshll.u32 [#allocation5], 4
      %s123 = int_to_ptr.vmem [resolvable:$true] %s122
      %s124 = sshll.u32 %s2, 4
      %s125 = int_to_ptr.hbm [resolvable:$true] %s124
      %127 = dma.vmem_to_hbm [thread:$0]  %s123, 16, %s125, [#allocation6]
    $region21: #{tpu_custom_call.1} parent=1 // pred_fallthru
      _
    // Predicated region
    $region22: #{tpu_custom_call.1} parent=1 // pred_check
      _
    $region23: #{tpu_custom_call.1} parent=1 // pred_check_branch
      %129 = sbr.rel (0) target = $region25
    $region24: #{tpu_custom_call.1} parent=1 // pred_region
      %131 = dma.done [#allocation6], 16
    $region25: #{tpu_custom_call.1} parent=1 // pred_fallthru
      _
    %132 = vsyncpa [#allocation6], 1

</llo_original>
